<compile_context>
chip_gen: v7x
topology: tpu7x:2x2x1
jax: 0.10.0
libtpu: 0.0.40
codegen_flags: <defaults>
</compile_context>

<pallas_src>
import jax
import jax.numpy as jnp
from jax.experimental import pallas as pl
from jax.experimental.pallas import tpu as pltpu


def _round_up(x, m):
    return (x + m - 1) // m * m


def _attn_adj_kernel_plain(z_ref, w1_ref, b1_ref, w2_ref, out_ref):
    """Rows already lane-dense (in_size >= 128, or not packable into 128)."""
    z = z_ref[...].astype(jnp.float32)                                   # (T, D)
    h = jnp.tanh(
        jnp.dot(z, w1_ref[...], preferred_element_type=jnp.float32)     # MXU
        + b1_ref[...]
    )                                                                    # (T, H)
    w = jnp.sum(h * w2_ref[...], axis=-1, keepdims=True)                 # (T, 1)
    beta = jax.nn.sigmoid(w)                                             # (T, 1)
    out_ref[...] = (beta * z).astype(out_ref.dtype)


def _attn_adj_kernel_packed(z_ref, w1_ref, b1_ref, w2_ref, m_ref, out_ref):
    """P original rows packed per 128-lane slab.

    w1_ref is block-diagonal (P copies of W1 on the diagonal), b1/w2 are tiled
    P times, and m_ref is the 0/1 group-broadcast matrix that replicates each
    row's gate scalar across that row's in_size lane group.
    """
    z = z_ref[...].astype(jnp.float32)                                   # (T, P*D)
    h = jnp.tanh(
        jnp.dot(z, w1_ref[...], preferred_element_type=jnp.float32)
        + b1_ref[...]
    )                                                                    # (T, P*H)
    hp = h * w2_ref[...]                                                 # (T, P*H)
    # Per original row: sum over its hidden group, replicated across its lanes.
    w_exp = jnp.dot(hp, m_ref[...], preferred_element_type=jnp.float32)  # (T, P*D)
    beta = jax.nn.sigmoid(w_exp)
    out_ref[...] = (beta * z).astype(out_ref.dtype)


def attention_adj(z, w1, b1, w2, *, tile_rows=512):
    """sigmoid(Linear(hidden,1)(tanh(Linear(in,hidden)(z)))) * z.

    z: (..., in_size); w1: (in_size, hidden); b1: (hidden,); w2: (hidden,) or
    (hidden, 1).  Returns an array with the same shape and dtype as z.
    """
    orig_shape = z.shape
    in_size = orig_shape[-1]
    hidden = w1.shape[1]
    dtype = z.dtype
    itemsize = jnp.dtype(dtype).itemsize
    f32 = jnp.float32

    z2d = z.reshape(-1, in_size)
    rows = z2d.shape[0]

    # Lane packing factor: pack P rows per 128-lane slab when in_size < 128.
    if in_size < 128 and 128 % in_size == 0:
        pack = 128 // in_size
    else:
        pack = 1
    width = pack * in_size

    # Tile size (in packed rows): as large as tile_rows / VMEM allow, but keep
    # roughly >= 8 grid steps when the input is big enough (v7x megacore + pipelining).
    packed_rows = -(-rows // pack)                        # cdiv
    vmem_budget_io = 8 * 1024 * 1024                      # double-buffered in+out tiles
    max_tile_vmem = max(8, (vmem_budget_io // (4 * width * itemsize)) // 8 * 8)
    tile = min(tile_rows, max_tile_vmem)
    tile = min(tile, _round_up(-(-packed_rows // 8), 8))  # aim for >= ~8 grid steps
    tile = max(8, _round_up(tile, 8))

    padded_packed = _round_up(packed_rows, tile)
    padded_rows = padded_packed * pack
    if padded_rows != rows:
        z2d = jnp.pad(z2d, ((0, padded_rows - rows), (0, 0)))
    z_in = z2d.reshape(padded_packed, width)              # lane-dense input slab

    b1_t = jnp.tile(b1.reshape(1, hidden).astype(f32), (1, pack))   # (1, P*H)
    w2_t = jnp.tile(w2.reshape(1, hidden).astype(f32), (1, pack))   # (1, P*H)

    if pack > 1:
        # Block-diagonal W1 (P copies along the diagonal).
        eye = jnp.eye(pack, dtype=f32)
        w1_k = (eye[:, None, :, None] * w1.astype(f32)[None, :, None, :]).reshape(
            pack * in_size, pack * hidden)
        # 0/1 group-broadcast: hidden-group g -> in_size-group g.
        gj = jnp.arange(pack * hidden) // hidden
        gk = jnp.arange(pack * in_size) // in_size
        m_mat = (gj[:, None] == gk[None, :]).astype(f32)            # (P*H, P*D)
        kernel = _attn_adj_kernel_packed
        weights = (w1_k, b1_t, w2_t, m_mat)
        # Constant index maps -> weights are DMA'd once (tiny here, so default
        # double-buffered allocation is fine).
        in_specs = [
            pl.BlockSpec((tile, width), lambda i: (i, 0)),
            pl.BlockSpec((pack * in_size, pack * hidden), lambda i: (0, 0)),
            pl.BlockSpec((1, pack * hidden), lambda i: (0, 0)),
            pl.BlockSpec((1, pack * hidden), lambda i: (0, 0)),
            pl.BlockSpec((pack * hidden, pack * in_size), lambda i: (0, 0)),
        ]
        weight_bytes = (w1_k.size + b1_t.size + w2_t.size + m_mat.size) * 4
        extra_flops = 2 * padded_packed * (pack * hidden) * width
    else:
        w1_k = w1.astype(f32)
        kernel = _attn_adj_kernel_plain
        weights = (w1_k, b1_t, w2_t)
        in_specs = [
            pl.BlockSpec((tile, width), lambda i: (i, 0)),
            pl.BlockSpec((in_size, hidden), lambda i: (0, 0)),
            pl.BlockSpec((1, hidden), lambda i: (0, 0)),
            pl.BlockSpec((1, hidden), lambda i: (0, 0)),
        ]
        weight_bytes = (w1_k.size + b1_t.size + w2_t.size) * 4
        extra_flops = 0

    n_io_elems = padded_packed * width
    cost = pl.CostEstimate(
        flops=int(2 * padded_packed * width * pack * hidden + extra_flops),
        transcendentals=int(padded_packed * pack * hidden + n_io_elems),
        bytes_accessed=int(2 * n_io_elems * itemsize + weight_bytes),
    )

    out = pl.pallas_call(
        kernel,
        out_shape=jax.ShapeDtypeStruct((padded_packed, width), dtype),
        grid_spec=pltpu.PrefetchScalarGridSpec(
            num_scalar_prefetch=0,
            grid=(padded_packed // tile,),
            in_specs=in_specs,
            out_specs=pl.BlockSpec((tile, width), lambda i: (i, 0)),
        ),
        compiler_params=pltpu.CompilerParams(
            dimension_semantics=("parallel",),
            vmem_limit_bytes=32 * 1024 * 1024,
        ),
        cost_estimate=cost,
    )(z_in, *weights)

    out = out.reshape(padded_rows, in_size)[:rows]
    return out.reshape(orig_shape)


def reference_attention_adj(z, w1, b1, w2):
    zf = z.astype(jnp.float32)
    h = jnp.tanh(zf @ w1 + b1)
    w = h @ w2.reshape(-1, 1)
    beta = jax.nn.sigmoid(w)
    return beta * zf


if __name__ == "__main__":
    # Shapes consistent with the module defaults: in_size = hidden_size = 64,
    # z of shape (batch, nodes, in_size).
    B, N, IN_SIZE, HIDDEN = 2, 8, 64, 64

    key = jax.random.PRNGKey(0)
    k_z, k_w1, k_b1, k_w2 = jax.random.split(key, 4)

    z = jax.random.normal(k_z, (B, N, IN_SIZE), dtype=jnp.float32)
    w1 = jax.random.normal(k_w1, (IN_SIZE, HIDDEN), dtype=jnp.float32) * 0.1
    b1 = jax.random.normal(k_b1, (HIDDEN,), dtype=jnp.float32) * 0.1
    w2 = jax.random.normal(k_w2, (HIDDEN,), dtype=jnp.float32) * 0.1

    # f32 path (packed: 2 rows per 128-lane slab since in_size=64).
    out = jax.block_until_ready(attention_adj(z, w1, b1, w2))
    ref = reference_attention_adj(z, w1, b1, w2)
    assert out.shape == z.shape and out.dtype == z.dtype
    assert jnp.allclose(out, ref, atol=1e-4, rtol=1e-4)

    # Row count that is not a multiple of the tile (exercises pad/unpad path).
    z_odd = jax.random.normal(k_z, (3, 5, IN_SIZE), dtype=jnp.float32)
    out_odd = jax.block_until_ready(attention_adj(z_odd, w1, b1, w2))
    ref_odd = reference_attention_adj(z_odd, w1, b1, w2)
    assert out_odd.shape == z_odd.shape
    assert jnp.allclose(out_odd, ref_odd, atol=1e-4, rtol=1e-4)

    # bf16 I/O path: HBM traffic halves, math stays f32 inside the kernel.
    z_bf16 = z.astype(jnp.bfloat16)
    out_bf = jax.block_until_ready(attention_adj(z_bf16, w1, b1, w2))
    ref_bf = reference_attention_adj(z_bf16, w1, b1, w2)
    assert out_bf.dtype == jnp.bfloat16
    assert jnp.allclose(out_bf.astype(jnp.float32), ref_bf, atol=3e-2, rtol=3e-2)

    print("KERNEL_OK")
</pallas_src>

<mosaic_0001>
module attributes {stable_mosaic.version = 11 : i64} {
  func.func @_attn_adj_kernel_packed(%arg0: i32, %arg1: memref<8x128xf32, #tpu.memory_space<vmem>>, %arg2: memref<128x128xf32, #tpu.memory_space<vmem>>, %arg3: memref<1x128xf32, #tpu.memory_space<vmem>>, %arg4: memref<1x128xf32, #tpu.memory_space<vmem>>, %arg5: memref<128x128xf32, #tpu.memory_space<vmem>>, %arg6: memref<8x128xf32, #tpu.memory_space<vmem>>) attributes {dimension_semantics = [#tpu.dimension_semantics<parallel>], iteration_bounds = array<i64: 1>, scalar_prefetch = 0 : i64, scratch_operands = 0 : i64, tpu.core_type = #tpu.core_type<tc>, window_params = [{transform_indices = @transform_0, window_bounds = array<i64: 8, 128>}, {pipeline_mode = #tpu.pipeline_mode<synchronous>, transform_indices = @transform_1, window_bounds = array<i64: 128, 128>}, {pipeline_mode = #tpu.pipeline_mode<synchronous>, transform_indices = @transform_2, window_bounds = array<i64: 1, 128>}, {pipeline_mode = #tpu.pipeline_mode<synchronous>, transform_indices = @transform_3, window_bounds = array<i64: 1, 128>}, {pipeline_mode = #tpu.pipeline_mode<synchronous>, transform_indices = @transform_4, window_bounds = array<i64: 128, 128>}, {transform_indices = @transform_5, window_bounds = array<i64: 8, 128>}]} {
    %c0 = arith.constant 0 : index
    %c0_0 = arith.constant 0 : index
    %0 = vector.load %arg1[%c0, %c0_0] : memref<8x128xf32, #tpu.memory_space<vmem>>, vector<8x128xf32>
    %c0_1 = arith.constant 0 : index
    %c0_2 = arith.constant 0 : index
    %1 = vector.load %arg2[%c0_1, %c0_2] : memref<128x128xf32, #tpu.memory_space<vmem>>, vector<128x128xf32>
    %cst = arith.constant dense<0.000000e+00> : vector<8x128xf32>
    %2 = tpu.matmul %0, %1, %cst {dimension_numbers = #tpu.dot_dimension_numbers<[1], [0], [0], [1], [0, 0, 1, 1], [], []>} : vector<8x128xf32>, vector<128x128xf32>, vector<8x128xf32> -> vector<8x128xf32>
    %c0_3 = arith.constant 0 : index
    %c0_4 = arith.constant 0 : index
    %3 = vector.load %arg3[%c0_3, %c0_4] : memref<1x128xf32, #tpu.memory_space<vmem>>, vector<1x128xf32>
    %4 = vector.broadcast %3 : vector<1x128xf32> to vector<8x128xf32>
    %5 = arith.addf %2, %4 : vector<8x128xf32>
    %6 = math.tanh %5 : vector<8x128xf32>
    %c0_5 = arith.constant 0 : index
    %c0_6 = arith.constant 0 : index
    %7 = vector.load %arg4[%c0_5, %c0_6] : memref<1x128xf32, #tpu.memory_space<vmem>>, vector<1x128xf32>
    %8 = vector.broadcast %7 : vector<1x128xf32> to vector<8x128xf32>
    %9 = arith.mulf %6, %8 : vector<8x128xf32>
    %c0_7 = arith.constant 0 : index
    %c0_8 = arith.constant 0 : index
    %10 = vector.load %arg5[%c0_7, %c0_8] : memref<128x128xf32, #tpu.memory_space<vmem>>, vector<128x128xf32>
    %cst_9 = arith.constant dense<0.000000e+00> : vector<8x128xf32>
    %11 = tpu.matmul %9, %10, %cst_9 {dimension_numbers = #tpu.dot_dimension_numbers<[1], [0], [0], [1], [0, 0, 1, 1], [], []>} : vector<8x128xf32>, vector<128x128xf32>, vector<8x128xf32> -> vector<8x128xf32>
    %12 = arith.negf %11 : vector<8x128xf32>
    %13 = math.exp %12 : vector<8x128xf32>
    %cst_10 = arith.constant 1.000000e+00 : f32
    %14 = vector.broadcast %cst_10 : f32 to vector<8x128xf32>
    %15 = arith.addf %14, %13 : vector<8x128xf32>
    %16 = arith.divf %14, %15 : vector<8x128xf32>
    %17 = arith.mulf %16, %0 : vector<8x128xf32>
    %c0_11 = arith.constant 0 : index
    %c0_12 = arith.constant 0 : index
    %18 = vector.load %arg6[%c0_11, %c0_12] : memref<8x128xf32, #tpu.memory_space<vmem>>, vector<8x128xf32>
    tpu.vector_store %arg6[%c0_11, %c0_12], %17 {strides = array<i32>} : memref<8x128xf32, #tpu.memory_space<vmem>>, vector<8x128xf32>,
    return
  }
  func.func @transform_0(%arg0: i32) -> (i32, i32) {
    %c0_i32 = arith.constant 0 : i32
    %c0_i32_0 = arith.constant 0 : i32
    return %arg0, %c0_i32 : i32, i32
  }
  func.func @transform_1(%arg0: i32) -> (i32, i32) {
    %c0_i32 = arith.constant 0 : i32
    %c0_i32_0 = arith.constant 0 : i32
    %c0_i32_1 = arith.constant 0 : i32
    return %c0_i32, %c0_i32_0 : i32, i32
  }
  func.func @transform_2(%arg0: i32) -> (i32, i32) {
    %c0_i32 = arith.constant 0 : i32
    %c0_i32_0 = arith.constant 0 : i32
    %c0_i32_1 = arith.constant 0 : i32
    return %c0_i32, %c0_i32_0 : i32, i32
  }
  func.func @transform_3(%arg0: i32) -> (i32, i32) {
    %c0_i32 = arith.constant 0 : i32
    %c0_i32_0 = arith.constant 0 : i32
    %c0_i32_1 = arith.constant 0 : i32
    return %c0_i32, %c0_i32_0 : i32, i32
  }
  func.func @transform_4(%arg0: i32) -> (i32, i32) {
    %c0_i32 = arith.constant 0 : i32
    %c0_i32_0 = arith.constant 0 : i32
    %c0_i32_1 = arith.constant 0 : i32
    return %c0_i32, %c0_i32_0 : i32, i32
  }
  func.func @transform_5(%arg0: i32) -> (i32, i32) {
    %c0_i32 = arith.constant 0 : i32
    %c0_i32_0 = arith.constant 0 : i32
    return %arg0, %c0_i32 : i32, i32
  }
}

</mosaic_0001>

<llo_original>
// kernel: tpu_custom_call.1
$region0: #{tpu_custom_call.1}
  #allocation0 [shape = 'u32[]', space=smem, size = 0x4, offset = 0x4, fixed_abs, tag = 'smem constant byte address 0x4 - core index']
  #allocation1 [shape = 'u32[144,128]{1,0:T(1,128)}', space=vmem, size = 0x12000, scoped, tag = 'internal scratch']
  %s0 = inlined_call_operand.hbm [shape: f32[8,128], index: 0, kind: input, shape index: {}]
  %s1 = inlined_call_operand.hbm [shape: f32[128,128], index: 1, kind: input, shape index: {}]
  %s2 = inlined_call_operand.vmem [shape: f32[1,128], index: 2, kind: input, shape index: {}]
  %s3 = inlined_call_operand.vmem [shape: f32[1,128], index: 3, kind: input, shape index: {}]
  %s4 = inlined_call_operand.hbm [shape: f32[128,128], index: 4, kind: input, shape index: {}]
  %s5 = inlined_call_operand.hbm [shape: f32[8,128], index: 5, kind: output, shape index: {}]
  %s6 = sld [smem:[#allocation0]]
  $region42: #{tpu_custom_call.1} parent=0
    _
  %s8 = ssub.s32 1, %s6
  %s9 = scalar_select 0, %s8, %s6
  $region1: #{tpu_custom_call.1} parent=0
    #allocation2 [shape = 'u8[4096]{0}', space=vmem, size = 0x1000, scoped, tag = 'input window, operand 0, single buffered']
    #allocation3 [shape = 's32[1]{0}', space=sflag, size = 0x4, scoped, tag = 'scoped memory for tpu_custom_call.1']
    #allocation4 [shape = 's32[1]{0}', space=sflag, size = 0x4, scoped, tag = 'scoped memory for tpu_custom_call.1']
    #allocation5 [shape = 'u8[65536]{0}', space=vmem, size = 0x10000, scoped, tag = 'input window, operand 1, single buffered']
    #allocation6 [shape = 's32[1]{0}', space=sflag, size = 0x4, scoped, tag = 'scoped memory for tpu_custom_call.1']
    #allocation7 [shape = 'u8[65536]{0}', space=vmem, size = 0x10000, scoped, tag = 'input window, operand 4, single buffered']
    #allocation8 [shape = 'u8[4096]{0}', space=vmem, size = 0x1000, scoped, tag = 'output window, operand 0, single buffered']
    %10 = vsyncpa [#allocation3], 0
    %11 = vsyncpa [#allocation6], 0
    %12 = vsyncpa [#allocation4], 0
    // Predicated region
    $region2: #{tpu_custom_call.1} parent=1 // pred_check
      _
    $region3: #{tpu_custom_call.1} parent=1 // pred_check_branch
      %14 = sbr.rel (0) target = $region5
    $region4: #{tpu_custom_call.1} parent=1 // pred_region
      %s16 = ssub.s32 128, 128
      %17 = vsyncadd [#allocation3], %s16
      %s19 = sshll.u32 [#allocation2], 4
      %s20 = int_to_ptr.vmem [resolvable:$true] %s19
      %22 = dma.hbm_to_vmem [thread:$0]  %s0, 128, %s20, [#allocation3]
    $region5: #{tpu_custom_call.1} parent=1 // pred_fallthru
      _
    // Predicated region
    $region6: #{tpu_custom_call.1} parent=1 // pred_check
      _
    $region7: #{tpu_custom_call.1} parent=1 // pred_check_branch
      %24 = sbr.rel (0) target = $region9
    $region8: #{tpu_custom_call.1} parent=1 // pred_region
      %s26 = ssub.s32 2048, 2048
      %27 = vsyncadd [#allocation6], %s26
      %s28 = sshll.u32 [#allocation5], 4
      %s29 = int_to_ptr.vmem [resolvable:$true] %s28
      %34 = dma.hbm_to_vmem [thread:$0]  %s1, 2048, %s29, [#allocation6], 128, 128, 8
    $region9: #{tpu_custom_call.1} parent=1 // pred_fallthru
      _
    // Predicated region
    $region10: #{tpu_custom_call.1} parent=1 // pred_check
      _
    $region11: #{tpu_custom_call.1} parent=1 // pred_check_branch
      %36 = sbr.rel (0) target = $region13
    $region12: #{tpu_custom_call.1} parent=1 // pred_region
      _
    $region13: #{tpu_custom_call.1} parent=1 // pred_fallthru
      _
    // Predicated region
    $region14: #{tpu_custom_call.1} parent=1 // pred_check
      _
    $region15: #{tpu_custom_call.1} parent=1 // pred_check_branch
      %38 = sbr.rel (0) target = $region17
    $region16: #{tpu_custom_call.1} parent=1 // pred_region
      _
    $region17: #{tpu_custom_call.1} parent=1 // pred_fallthru
      _
    // Predicated region
    $region18: #{tpu_custom_call.1} parent=1 // pred_check
      _
    $region19: #{tpu_custom_call.1} parent=1 // pred_check_branch
      %40 = sbr.rel (0) target = $region21
    $region20: #{tpu_custom_call.1} parent=1 // pred_region
      %s42 = ssub.s32 2048, 2048
      %43 = vsyncadd [#allocation6], %s42
      %s44 = sshll.u32 [#allocation7], 4
      %s45 = int_to_ptr.vmem [resolvable:$true] %s44
      %50 = dma.hbm_to_vmem [thread:$0]  %s4, 2048, %s45, [#allocation6], 128, 128, 8
    $region21: #{tpu_custom_call.1} parent=1 // pred_fallthru
      _
    // Predicated region
    $region22: #{tpu_custom_call.1} parent=1 // pred_check
      _
    $region23: #{tpu_custom_call.1} parent=1 // pred_check_branch
      %52 = sbr.rel (0) target = $region25
    $region24: #{tpu_custom_call.1} parent=1 // pred_region
      %53 = dma.done [#allocation3], 128
    $region25: #{tpu_custom_call.1} parent=1 // pred_fallthru
      _
    // Predicated region
    $region26: #{tpu_custom_call.1} parent=1 // pred_check
      _
    $region27: #{tpu_custom_call.1} parent=1 // pred_check_branch
      %55 = sbr.rel (0) target = $region29
    $region28: #{tpu_custom_call.1} parent=1 // pred_region
      %56 = dma.done [#allocation6], 2048
    $region29: #{tpu_custom_call.1} parent=1 // pred_fallthru
      _
    // Predicated region
    $region30: #{tpu_custom_call.1} parent=1 // pred_check
      _
    $region31: #{tpu_custom_call.1} parent=1 // pred_check_branch
      %58 = sbr.rel (0) target = $region33
    $region32: #{tpu_custom_call.1} parent=1 // pred_region
      %59 = dma.done [#allocation6], 2048
    $region33: #{tpu_custom_call.1} parent=1 // pred_fallthru
      _
    %v60 = vld [vmem:[#allocation2] sm:$0xff]
    %v61 = vld [vmem:[#allocation5] sm:$0xff]
    %v62 = vld [vmem:[#allocation5 + $0x8] sm:$0xff]
    %v63 = vld [vmem:[#allocation5 + $0x10] sm:$0xff]
    %v64 = vld [vmem:[#allocation5 + $0x18] sm:$0xff]
    %v65 = vld [vmem:[#allocation5 + $0x20] sm:$0xff]
    %v66 = vld [vmem:[#allocation5 + $0x28] sm:$0xff]
    %v67 = vld [vmem:[#allocation5 + $0x30] sm:$0xff]
    %v68 = vld [vmem:[#allocation5 + $0x38] sm:$0xff]
    %v69 = vld [vmem:[#allocation5 + $0x40] sm:$0xff]
    %v70 = vld [vmem:[#allocation5 + $0x48] sm:$0xff]
    %v71 = vld [vmem:[#allocation5 + $0x50] sm:$0xff]
    %v72 = vld [vmem:[#allocation5 + $0x58] sm:$0xff]
    %v73 = vld [vmem:[#allocation5 + $0x60] sm:$0xff]
    %v74 = vld [vmem:[#allocation5 + $0x68] sm:$0xff]
    %v75 = vld [vmem:[#allocation5 + $0x70] sm:$0xff]
    %v76 = vld [vmem:[#allocation5 + $0x78] sm:$0xff]
    %v77 = vld [vmem:[%s2] sm:$0x1]
    %v79 = vlaneseq
    %v80 = vshrl.u32 %v79, 7
    %v81 = vsub.s32 0, %v80
    %v82 = vrot.slane %v77, %v81
    %84 = vmatprep.subr.mxu0 0.0
    %85 = vmatpush1.msra.mxu0 %v61
    %86 = vmatprep.subr.mxu0 0.0
    %87 = vmatpush1.msra.mxu0 %v62
    %88 = vmatprep.subr.mxu0 0.0
    %89 = vmatpush1.msra.mxu0 %v63
    %90 = vmatprep.subr.mxu0 0.0
    %91 = vmatpush1.msra.mxu0 %v64
    %92 = vmatprep.subr.mxu0 0.0
    %93 = vmatpush1.msra.mxu0 %v65
    %94 = vmatprep.subr.mxu0 0.0
    %95 = vmatpush1.msra.mxu0 %v66
    %96 = vmatprep.subr.mxu0 0.0
    %97 = vmatpush1.msra.mxu0 %v67
    %98 = vmatprep.subr.mxu0 0.0
    %99 = vmatpush1.msra.mxu0 %v68
    %100 = vmatprep.subr.mxu0 0.0
    %101 = vmatpush1.msra.mxu0 %v69
    %102 = vmatprep.subr.mxu0 0.0
    %103 = vmatpush1.msra.mxu0 %v70
    %104 = vmatprep.subr.mxu0 0.0
    %105 = vmatpush1.msra.mxu0 %v71
    %106 = vmatprep.subr.mxu0 0.0
    %107 = vmatpush1.msra.mxu0 %v72
    %108 = vmatprep.subr.mxu0 0.0
    %109 = vmatpush1.msra.mxu0 %v73
    %110 = vmatprep.subr.mxu0 0.0
    %111 = vmatpush1.msra.mxu0 %v74
    %112 = vmatprep.subr.mxu0 0.0
    %113 = vmatpush1.msra.mxu0 %v75
    %114 = vmatprep.subr.mxu0 0.0
    %115 = vmatpush1.msra.mxu0 %v76
    %116 = vmatprep.subr.mxu0 0.0
    %117 = vmatpush1.msra.mxu0 0.0
    %118 = vmatprep.subr.mxu0 0.0
    %119 = vmatpush1.msra.mxu0 0.0
    %120 = vmatprep.subr.mxu0 0.0
    %121 = vmatpush1.msra.mxu0 0.0
    %122 = vmatprep.subr.mxu0 0.0
    %123 = vmatpush1.msra.mxu0 0.0
    %124 = vmatprep.subr.mxu0 0.0
    %125 = vmatpush1.msra.mxu0 0.0
    %126 = vmatprep.subr.mxu0 0.0
    %127 = vmatpush1.msra.mxu0 0.0
    %128 = vmatprep.subr.mxu0 0.0
    %129 = vmatpush1.msra.mxu0 0.0
    %130 = vmatprep.subr.mxu0 0.0
    %131 = vmatpush1.msra.mxu0 0.0
    %132 = vmatprep.subr.mxu0 0.0
    %133 = vmatpush1.msra.mxu0 0.0
    %134 = vmatprep.subr.mxu0 0.0
    %135 = vmatpush1.msra.mxu0 0.0
    %136 = vmatprep.subr.mxu0 0.0
    %137 = vmatpush1.msra.mxu0 0.0
    %138 = vmatprep.subr.mxu0 0.0
    %139 = vmatpush1.msra.mxu0 0.0
    %140 = vmatprep.subr.mxu0 0.0
    %141 = vmatpush1.msra.mxu0 0.0
    %142 = vmatprep.subr.mxu0 0.0
    %143 = vmatpush1.msra.mxu0 0.0
    %144 = vmatprep.subr.mxu0 0.0
    %145 = vmatpush1.msra.mxu0 0.0
    %146 = vmatprep.subr.mxu0 0.0
    %147 = vmatpush1.msra.mxu0 0.0
    %148 = vmatprep.mubr.f32.mxu0 0.0
    %149 = vmatmul.mubr.f32.gmra.mrb[0].mxu0 %v60
    %v150 = vpop.f32.mrb[0].mxu0
    %v151 = vadd.f32 %v82, %v150
    %v152 = vpop.f32.mrb[0].mxu0
    %153 = vdwg.mxu0
    %v154 = vtanh.pop %v151
    %v155 = vld [vmem:[%s3] sm:$0x1]
    %v157 = vlaneseq
    %v158 = vshrl.u32 %v157, 7
    %v159 = vsub.s32 0, %v158
    %v160 = vrot.slane %v155, %v159
    %v162 = vmul.f32 %v154, %v160
    %v163 = vld [vmem:[#allocation7] sm:$0xff]
    %v164 = vld [vmem:[#allocation7 + $0x8] sm:$0xff]
    %v165 = vld [vmem:[#allocation7 + $0x10] sm:$0xff]
    %v166 = vld [vmem:[#allocation7 + $0x18] sm:$0xff]
    %v167 = vld [vmem:[#allocation7 + $0x20] sm:$0xff]
    %v168 = vld [vmem:[#allocation7 + $0x28] sm:$0xff]
    %v169 = vld [vmem:[#allocation7 + $0x30] sm:$0xff]
    %v170 = vld [vmem:[#allocation7 + $0x38] sm:$0xff]
    %v171 = vld [vmem:[#allocation7 + $0x40] sm:$0xff]
    %v172 = vld [vmem:[#allocation7 + $0x48] sm:$0xff]
    %v173 = vld [vmem:[#allocation7 + $0x50] sm:$0xff]
    %v174 = vld [vmem:[#allocation7 + $0x58] sm:$0xff]
    %v175 = vld [vmem:[#allocation7 + $0x60] sm:$0xff]
    %v176 = vld [vmem:[#allocation7 + $0x68] sm:$0xff]
    %v177 = vld [vmem:[#allocation7 + $0x70] sm:$0xff]
    %v178 = vld [vmem:[#allocation7 + $0x78] sm:$0xff]
    %179 = vmatprep.subr.mxu0 0.0
    %180 = vmatpush1.msra.mxu0 %v163
    %181 = vmatprep.subr.mxu0 0.0
    %182 = vmatpush1.msra.mxu0 %v164
    %183 = vmatprep.subr.mxu0 0.0
    %184 = vmatpush1.msra.mxu0 %v165
    %185 = vmatprep.subr.mxu0 0.0
    %186 = vmatpush1.msra.mxu0 %v166
    %187 = vmatprep.subr.mxu0 0.0
    %188 = vmatpush1.msra.mxu0 %v167
    %189 = vmatprep.subr.mxu0 0.0
    %190 = vmatpush1.msra.mxu0 %v168
    %191 = vmatprep.subr.mxu0 0.0
    %192 = vmatpush1.msra.mxu0 %v169
    %193 = vmatprep.subr.mxu0 0.0
    %194 = vmatpush1.msra.mxu0 %v170
    %195 = vmatprep.subr.mxu0 0.0
    %196 = vmatpush1.msra.mxu0 %v171
    %197 = vmatprep.subr.mxu0 0.0
    %198 = vmatpush1.msra.mxu0 %v172
    %199 = vmatprep.subr.mxu0 0.0
    %200 = vmatpush1.msra.mxu0 %v173
    %201 = vmatprep.subr.mxu0 0.0
    %202 = vmatpush1.msra.mxu0 %v174
    %203 = vmatprep.subr.mxu0 0.0
    %204 = vmatpush1.msra.mxu0 %v175
    %205 = vmatprep.subr.mxu0 0.0
    %206 = vmatpush1.msra.mxu0 %v176
    %207 = vmatprep.subr.mxu0 0.0
    %208 = vmatpush1.msra.mxu0 %v177
    %209 = vmatprep.subr.mxu0 0.0
    %210 = vmatpush1.msra.mxu0 %v178
    %211 = vmatprep.subr.mxu0 0.0
    %212 = vmatpush1.msra.mxu0 0.0
    %213 = vmatprep.subr.mxu0 0.0
    %214 = vmatpush1.msra.mxu0 0.0
    %215 = vmatprep.subr.mxu0 0.0
    %216 = vmatpush1.msra.mxu0 0.0
    %217 = vmatprep.subr.mxu0 0.0
    %218 = vmatpush1.msra.mxu0 0.0
    %219 = vmatprep.subr.mxu0 0.0
    %220 = vmatpush1.msra.mxu0 0.0
    %221 = vmatprep.subr.mxu0 0.0
    %222 = vmatpush1.msra.mxu0 0.0
    %223 = vmatprep.subr.mxu0 0.0
    %224 = vmatpush1.msra.mxu0 0.0
    %225 = vmatprep.subr.mxu0 0.0
    %226 = vmatpush1.msra.mxu0 0.0
    %227 = vmatprep.subr.mxu0 0.0
    %228 = vmatpush1.msra.mxu0 0.0
    %229 = vmatprep.subr.mxu0 0.0
    %230 = vmatpush1.msra.mxu0 0.0
    %231 = vmatprep.subr.mxu0 0.0
    %232 = vmatpush1.msra.mxu0 0.0
    %233 = vmatprep.subr.mxu0 0.0
    %234 = vmatpush1.msra.mxu0 0.0
    %235 = vmatprep.subr.mxu0 0.0
    %236 = vmatpush1.msra.mxu0 0.0
    %237 = vmatprep.subr.mxu0 0.0
    %238 = vmatpush1.msra.mxu0 0.0
    %239 = vmatprep.subr.mxu0 0.0
    %240 = vmatpush1.msra.mxu0 0.0
    %241 = vmatprep.subr.mxu0 0.0
    %242 = vmatpush1.msra.mxu0 0.0
    %243 = vmatprep.mubr.f32.mxu0 0.0
    %244 = vmatmul.mubr.f32.gmra.mrb[0].mxu0 %v162
    %v245 = vpop.f32.mrb[0].mxu0
    %v246 = vadd.f32 0.0, %v245
    %v247 = vpop.f32.mrb[0].mxu0
    %248 = vdwg.mxu0
    %v249 = vxor.u32 %v246, 2147483648
    %v250 = vmul.f32 %v249, 1.442695
    %v251 = vpow.pop %v250
    %v252 = vadd.f32 %v251, 1.0
    %v253 = vrcp.pop %v252
    %v254 = vmul.f32 1.0, %v253
    %v255 = vmul.f32 %v254, %v60
    %256 = vst [vmem:[#allocation8] sm:$0xff] %v255
    // Predicated region
    $region34: #{tpu_custom_call.1} parent=1 // pred_check
      _
    $region35: #{tpu_custom_call.1} parent=1 // pred_check_branch
      %258 = sbr.rel (0) target = $region37
    $region36: #{tpu_custom_call.1} parent=1 // pred_region
      %s260 = ssub.s32 128, 128
      %261 = vsyncadd [#allocation4], %s260
      %s263 = sshll.u32 [#allocation8], 4
      %s264 = int_to_ptr.vmem [resolvable:$true] %s263
      %266 = dma.vmem_to_hbm [thread:$0]  %s264, 128, %s5, [#allocation4]
    $region37: #{tpu_custom_call.1} parent=1 // pred_fallthru
      _
    // Predicated region
    $region38: #{tpu_custom_call.1} parent=1 // pred_check
      _
    $region39: #{tpu_custom_call.1} parent=1 // pred_check_branch
      %268 = sbr.rel (0) target = $region41
    $region40: #{tpu_custom_call.1} parent=1 // pred_region
      %269 = dma.done [#allocation4], 128
    $region41: #{tpu_custom_call.1} parent=1 // pred_fallthru
      _
    %270 = vsyncpa [#allocation3], 1
    %271 = vsyncpa [#allocation6], 1
    %272 = vsyncpa [#allocation4], 1

</llo_original>
